<compile_context>
chip_gen: v5e
topology: v5e:2x2
jax: 0.10.0
libtpu: 0.0.40
codegen_flags: <defaults>
</compile_context>

<pallas_src>
import jax
import jax.numpy as jnp
from jax.experimental import pallas as pl
from jax.experimental.pallas import tpu as pltpu


def _round_up(n, m):
    return ((n + m - 1) // m) * m


# ----------------------------- Pallas kernels -------------------------------
def _pi_kernel_fused(x_ref, y_ref, wx_ref, wy_ref, b_ref, o_ref):
    # x_ref: (TB, Fx), y_ref: (TB, Fy)  input tiles
    # wx_ref: (1, Fx), wy_ref: (1, Fy)  split Linear weight (constant per grid)
    # b_ref:  (1,) f32 bias in SMEM
    # o_ref:  (TB, 1) output tile
    # Cast to f32 BEFORE the multiply (exact for f32, avoids product rounding
    # for low-precision inputs); VPU multiply + lane (XLU) reduce.
    sx = jnp.sum(x_ref[...].astype(jnp.float32) * wx_ref[...].astype(jnp.float32),
                 axis=-1, keepdims=True)
    sy = jnp.sum(y_ref[...].astype(jnp.float32) * wy_ref[...].astype(jnp.float32),
                 axis=-1, keepdims=True)
    o_ref[...] = (sx + sy + b_ref[0]).astype(o_ref.dtype)


def _pi_kernel_single(y_ref, w_ref, b_ref, o_ref):
    # data_heterogeneity_pi == False path: z = y_hat only.
    s = jnp.sum(y_ref[...].astype(jnp.float32) * w_ref[...].astype(jnp.float32),
                axis=-1, keepdims=True)
    o_ref[...] = (s + b_ref[0]).astype(o_ref.dtype)


# ------------------------------ tile sizing ----------------------------------
def _choose_tb(B, padded_row_bytes, target_step_bytes):
    """Rows per grid step: ~target_step_bytes of lane-padded input per step,
    multiple of 8 sublanes, capped by the batch, >=2 steps when possible."""
    tb = max(8, (target_step_bytes // max(padded_row_bytes, 1)) // 8 * 8)
    tb = min(tb, _round_up(B, 8))
    # Ensure >= 2 grid steps (megacore sharding on v7x) when the batch allows.
    if B >= 16 and pl.cdiv(B, tb) < 2:
        tb = _round_up(pl.cdiv(B, 2), 8)
    return tb


# ------------------------------- wrapper -------------------------------------
def pi_forward(x, y, weight, bias, data_heterogeneity_pi,
               target_step_bytes=6 << 20):
    """out = Linear(concat(x, y) if hetero else y); fused, batch-tiled,
    ragged last block handled by Pallas output masking (no pad copy)."""
    B = y.shape[0]
    dtype_bytes = jnp.dtype(y.dtype).itemsize
    b_smem = bias.reshape(1).astype(jnp.float32)

    if data_heterogeneity_pi:
        Fx = x.shape[1]
        Fy = y.shape[1]
        assert weight.shape == (1, Fx + Fy)
        wx = weight[:, :Fx]
        wy = weight[:, Fx:]

        # VMEM budgeting uses lane-padded widths (each block occupies
        # round_up(F, 128) lanes regardless of the real feature count).
        padded_row_bytes = dtype_bytes * (_round_up(Fx, 128) + _round_up(Fy, 128))
        tb = _choose_tb(B, padded_row_bytes, target_step_bytes)
        grid = (pl.cdiv(B, tb),)

        F_total = Fx + Fy
        cost = pl.CostEstimate(
            flops=2 * B * F_total,
            transcendentals=0,
            bytes_accessed=B * F_total * dtype_bytes + B * 4 + F_total * 4,
        )

        out = pl.pallas_call(
            _pi_kernel_fused,
            out_shape=jax.ShapeDtypeStruct((B, 1), jnp.float32),
            grid_spec=pltpu.PrefetchScalarGridSpec(
                num_scalar_prefetch=0,
                grid=grid,
                in_specs=[
                    pl.BlockSpec((tb, Fx), lambda i: (i, 0)),
                    pl.BlockSpec((tb, Fy), lambda i: (i, 0)),
                    pl.BlockSpec((1, Fx), lambda i: (0, 0)),
                    pl.BlockSpec((1, Fy), lambda i: (0, 0)),
                    pl.BlockSpec(memory_space=pltpu.MemorySpace.SMEM),
                ],
                out_specs=pl.BlockSpec((tb, 1), lambda i: (i, 0)),
            ),
            compiler_params=pltpu.CompilerParams(
                dimension_semantics=("parallel",)),
            cost_estimate=cost,
        )(x, y, wx, wy, b_smem)
    else:
        Fy = y.shape[1]
        assert weight.shape == (1, Fy)

        padded_row_bytes = dtype_bytes * _round_up(Fy, 128)
        tb = _choose_tb(B, padded_row_bytes, target_step_bytes)
        grid = (pl.cdiv(B, tb),)

        cost = pl.CostEstimate(
            flops=2 * B * Fy,
            transcendentals=0,
            bytes_accessed=B * Fy * dtype_bytes + B * 4 + Fy * 4,
        )

        out = pl.pallas_call(
            _pi_kernel_single,
            out_shape=jax.ShapeDtypeStruct((B, 1), jnp.float32),
            grid_spec=pltpu.PrefetchScalarGridSpec(
                num_scalar_prefetch=0,
                grid=grid,
                in_specs=[
                    pl.BlockSpec((tb, Fy), lambda i: (i, 0)),
                    pl.BlockSpec((1, Fy), lambda i: (0, 0)),
                    pl.BlockSpec(memory_space=pltpu.MemorySpace.SMEM),
                ],
                out_specs=pl.BlockSpec((tb, 1), lambda i: (i, 0)),
            ),
            compiler_params=pltpu.CompilerParams(
                dimension_semantics=("parallel",)),
            cost_estimate=cost,
        )(y, weight, b_smem)

    return out


# ------------------------------ Pi module ------------------------------------
class Pi:
    """JAX/Pallas port of the PyTorch Pi module."""

    def __init__(self, in_features=108, class_labels=200, params_init='xavier',
                 data_heterogeneity=True, key=jax.random.PRNGKey(0)):
        self.in_features = in_features
        fan_in = in_features + class_labels if data_heterogeneity else class_labels
        fan_out = 1
        k_w, k_b = jax.random.split(key)
        if params_init == 'xavier':
            # torch.nn.init.xavier_normal_: std = sqrt(2 / (fan_in + fan_out))
            std = jnp.sqrt(2.0 / (fan_in + fan_out))
            self.weight = std * jax.random.normal(k_w, (fan_out, fan_in), jnp.float32)
        else:
            bound_w = 1.0 / jnp.sqrt(fan_in)
            self.weight = jax.random.uniform(k_w, (fan_out, fan_in), jnp.float32,
                                             -bound_w, bound_w)
        # PyTorch Linear bias default init: U(-1/sqrt(fan_in), 1/sqrt(fan_in))
        bound = 1.0 / jnp.sqrt(fan_in)
        self.bias = jax.random.uniform(k_b, (fan_out,), jnp.float32, -bound, bound)

    def __call__(self, x, y_hat, data_heterogeneity_pi):
        # data_heterogeneity_pi must be a static Python bool (selects between
        # two pallas_calls at trace time).
        y = jax.lax.stop_gradient(y_hat)          # y_hat.detach()
        return pi_forward(x, y, self.weight, self.bias, data_heterogeneity_pi)


# -------------------------------- demo ----------------------------------------
if __name__ == "__main__":
    key = jax.random.PRNGKey(0)
    k_mod1, k_mod2, k_x, k_y = jax.random.split(key, 4)

    in_features = 12       # "x" features (data heterogeneity part)
    class_labels = 20      # "y_hat" logits

    # --- heterogeneity path (batch not a multiple of 8 -> exercises the
    # ragged / masked last block with no wrapper-side padding) ---
    batch = 10
    model = Pi(in_features=in_features, class_labels=class_labels,
               params_init='xavier', data_heterogeneity=True, key=k_mod1)
    x = jax.random.normal(k_x, (batch, in_features), jnp.float32)
    y_hat = jax.random.normal(k_y, (batch, class_labels), jnp.float32)

    out = model(x, y_hat, data_heterogeneity_pi=True)
    out = jax.block_until_ready(out)
    ref = jnp.concatenate((x, y_hat), axis=1) @ model.weight.T + model.bias
    assert out.shape == (batch, 1)
    assert jnp.allclose(out, ref, atol=1e-5, rtol=1e-5)

    # --- y-only path (data_heterogeneity_pi=False) ---
    batch2 = 8
    model2 = Pi(in_features=in_features, class_labels=class_labels,
                params_init='xavier', data_heterogeneity=False, key=k_mod2)
    y_hat2 = jax.random.normal(k_y, (batch2, class_labels), jnp.float32)
    out2 = model2(x[:batch2], y_hat2, data_heterogeneity_pi=False)
    out2 = jax.block_until_ready(out2)
    ref2 = y_hat2 @ model2.weight.T + model2.bias
    assert out2.shape == (batch2, 1)
    assert jnp.allclose(out2, ref2, atol=1e-5, rtol=1e-5)

    # --- larger batch that spans multiple grid steps (multi-tile path) ---
    batch3 = 40
    x3 = jax.random.normal(k_x, (batch3, in_features), jnp.float32)
    y3 = jax.random.normal(k_y, (batch3, class_labels), jnp.float32)
    out3 = pi_forward(x3, y3, model.weight, model.bias, True,
                      target_step_bytes=16 * 128 * 4 * 2)  # force several tiles
    out3 = jax.block_until_ready(out3)
    ref3 = jnp.concatenate((x3, y3), axis=1) @ model.weight.T + model.bias
    assert out3.shape == (batch3, 1)
    assert jnp.allclose(out3, ref3, atol=1e-5, rtol=1e-5)

    print("KERNEL_OK")
</pallas_src>

<mosaic_0001>
module attributes {stable_mosaic.version = 11 : i64} {
  func.func @_pi_kernel_fused(%arg0: i32, %arg1: memref<16x12xf32, #tpu.memory_space<vmem>>, %arg2: memref<16x20xf32, #tpu.memory_space<vmem>>, %arg3: memref<1x12xf32, #tpu.memory_space<vmem>>, %arg4: memref<1x20xf32, #tpu.memory_space<vmem>>, %arg5: memref<1xf32, #tpu.memory_space<smem>>, %arg6: memref<16x1xf32, #tpu.memory_space<vmem>>) attributes {dimension_semantics = [#tpu.dimension_semantics<parallel>], iteration_bounds = array<i64: 1>, scalar_prefetch = 0 : i64, scratch_operands = 0 : i64, tpu.core_type = #tpu.core_type<tc>, window_params = [{transform_indices = @transform_0, window_bounds = array<i64: 16, 12>}, {transform_indices = @transform_1, window_bounds = array<i64: 16, 20>}, {pipeline_mode = #tpu.pipeline_mode<synchronous>, transform_indices = @transform_2, window_bounds = array<i64: 1, 12>}, {pipeline_mode = #tpu.pipeline_mode<synchronous>, transform_indices = @transform_3, window_bounds = array<i64: 1, 20>}, {transform_indices = @transform_4, window_bounds = array<i64: 1>}, {transform_indices = @transform_5, window_bounds = array<i64: 16, 1>}]} {
    %c0 = arith.constant 0 : index
    %c0_0 = arith.constant 0 : index
    %0 = vector.load %arg1[%c0, %c0_0] : memref<16x12xf32, #tpu.memory_space<vmem>>, vector<16x12xf32>
    %c0_1 = arith.constant 0 : index
    %c0_2 = arith.constant 0 : index
    %1 = vector.load %arg3[%c0_1, %c0_2] : memref<1x12xf32, #tpu.memory_space<vmem>>, vector<1x12xf32>
    %2 = vector.broadcast %1 : vector<1x12xf32> to vector<16x12xf32>
    %3 = arith.mulf %0, %2 : vector<16x12xf32>
    %cst = arith.constant dense<0.000000e+00> : vector<16xf32>
    %4 = vector.multi_reduction <add>, %3, %cst [1] : vector<16x12xf32> to vector<16xf32>
    %5 = vector.shape_cast %4 : vector<16xf32> to vector<16x1xf32>
    %c0_3 = arith.constant 0 : index
    %c0_4 = arith.constant 0 : index
    %6 = vector.load %arg2[%c0_3, %c0_4] : memref<16x20xf32, #tpu.memory_space<vmem>>, vector<16x20xf32>
    %c0_5 = arith.constant 0 : index
    %c0_6 = arith.constant 0 : index
    %7 = vector.load %arg4[%c0_5, %c0_6] : memref<1x20xf32, #tpu.memory_space<vmem>>, vector<1x20xf32>
    %8 = vector.broadcast %7 : vector<1x20xf32> to vector<16x20xf32>
    %9 = arith.mulf %6, %8 : vector<16x20xf32>
    %cst_7 = arith.constant dense<0.000000e+00> : vector<16xf32>
    %10 = vector.multi_reduction <add>, %9, %cst_7 [1] : vector<16x20xf32> to vector<16xf32>
    %11 = vector.shape_cast %10 : vector<16xf32> to vector<16x1xf32>
    %12 = arith.addf %5, %11 : vector<16x1xf32>
    %c0_8 = arith.constant 0 : index
    %13 = memref.load %arg5[%c0_8] : memref<1xf32, #tpu.memory_space<smem>>
    %14 = vector.broadcast %13 : f32 to vector<16x1xf32>
    %15 = arith.addf %12, %14 : vector<16x1xf32>
    %c0_9 = arith.constant 0 : index
    %c0_10 = arith.constant 0 : index
    %16 = vector.load %arg6[%c0_9, %c0_10] : memref<16x1xf32, #tpu.memory_space<vmem>>, vector<16x1xf32>
    tpu.vector_store %arg6[%c0_9, %c0_10], %15 {strides = array<i32>} : memref<16x1xf32, #tpu.memory_space<vmem>>, vector<16x1xf32>,
    return
  }
  func.func @transform_0(%arg0: i32) -> (i32, i32) {
    %c0_i32 = arith.constant 0 : i32
    %c0_i32_0 = arith.constant 0 : i32
    return %arg0, %c0_i32 : i32, i32
  }
  func.func @transform_1(%arg0: i32) -> (i32, i32) {
    %c0_i32 = arith.constant 0 : i32
    %c0_i32_0 = arith.constant 0 : i32
    return %arg0, %c0_i32 : i32, i32
  }
  func.func @transform_2(%arg0: i32) -> (i32, i32) {
    %c0_i32 = arith.constant 0 : i32
    %c0_i32_0 = arith.constant 0 : i32
    %c0_i32_1 = arith.constant 0 : i32
    return %c0_i32, %c0_i32_0 : i32, i32
  }
  func.func @transform_3(%arg0: i32) -> (i32, i32) {
    %c0_i32 = arith.constant 0 : i32
    %c0_i32_0 = arith.constant 0 : i32
    %c0_i32_1 = arith.constant 0 : i32
    return %c0_i32, %c0_i32_0 : i32, i32
  }
  func.func @transform_4(%arg0: i32) -> i32 {
    %c0_i32 = arith.constant 0 : i32
    %c0_i32_0 = arith.constant 0 : i32
    return %c0_i32 : i32
  }
  func.func @transform_5(%arg0: i32) -> (i32, i32) {
    %c0_i32 = arith.constant 0 : i32
    %c0_i32_0 = arith.constant 0 : i32
    return %arg0, %c0_i32 : i32, i32
  }
}

</mosaic_0001>

<llo_original>
// kernel: tpu_custom_call.1
$region0: #{tpu_custom_call.1}
  #allocation0 [shape = 'u32[]', space=smem, size = 0x4, offset = 0x4, fixed_abs, tag = 'smem constant byte address 0x4 - core index']
  #allocation1 [shape = 'u32[72,128]{1,0:T(1,128)}', space=vmem, size = 0x9000, scoped, tag = 'internal scratch']
  #allocation2 [shape = 'f32[1]{0:T(128)S(6)}', space=smem, size = 0x200, scoped, tag = 'scoped memory for tpu_custom_call.1']
  %s0 = inlined_call_operand.hbm [shape: f32[10,12], index: 0, kind: input, shape index: {}]
  %s1 = inlined_call_operand.hbm [shape: f32[10,20], index: 1, kind: input, shape index: {}]
  %s2 = inlined_call_operand.vmem [shape: f32[1,12], index: 2, kind: input, shape index: {}]
  %s3 = inlined_call_operand.vmem [shape: f32[1,20], index: 3, kind: input, shape index: {}]
  %s4 = inlined_call_operand.<no memory space> [shape: f32[1], index: 4, kind: input, shape index: {}]
  %s5 = inlined_call_operand.vmem [shape: f32[10,1], index: 5, kind: output, shape index: {}]
  %s6 = sld [smem:[#allocation0]]
  $region38: #{tpu_custom_call.1} parent=0
    _
  %s8 = ssub.s32 1, %s6
  %s9 = scalar_select 0, %s8, %s6
  %10 = sst [smem:[#allocation2]] %s4
  $region1: #{tpu_custom_call.1} parent=0
    #allocation3 [shape = 'u8[8192]{0}', space=vmem, size = 0x2000, scoped, tag = 'input window, operand 0, single buffered']
    #allocation4 [shape = 's32[1]{0}', space=sflag, size = 0x4, scoped, tag = 'scoped memory for tpu_custom_call.1']
    #allocation5 [shape = 'u8[8192]{0}', space=vmem, size = 0x2000, scoped, tag = 'input window, operand 1, single buffered']
    #allocation6 [shape = 's32[1]{0}', space=sflag, size = 0x4, scoped, tag = 'scoped memory for tpu_custom_call.1']
    %11 = vsyncpa [#allocation4], 0
    %12 = vsyncpa [#allocation6], 0
    // Predicated region
    $region2: #{tpu_custom_call.1} parent=1 // pred_check
      _
    $region3: #{tpu_custom_call.1} parent=1 // pred_check_branch
      %14 = sbr.rel (0) target = $region5
    $region4: #{tpu_custom_call.1} parent=1 // pred_region
      %16 = vsyncadd [#allocation4], 0
      %s17 = sshll.u32 %s0, 4
      %s18 = int_to_ptr.hbm [resolvable:$true] %s17
      %s19 = sshll.u32 [#allocation3], 4
      %s20 = int_to_ptr.vmem [resolvable:$true] %s19
      %25 = dma.hbm_to_vmem [thread:$0]  %s18, 256, %s20, [#allocation4], 128, 128, 8
    $region5: #{tpu_custom_call.1} parent=1 // pred_fallthru
      _
    // Predicated region
    $region6: #{tpu_custom_call.1} parent=1 // pred_check
      _
    $region7: #{tpu_custom_call.1} parent=1 // pred_check_branch
      %27 = sbr.rel (0) target = $region9
    $region8: #{tpu_custom_call.1} parent=1 // pred_region
      %29 = vsyncadd [#allocation6], 0
      %s30 = sshll.u32 %s1, 4
      %s31 = int_to_ptr.hbm [resolvable:$true] %s30
      %s32 = sshll.u32 [#allocation5], 4
      %s33 = int_to_ptr.vmem [resolvable:$true] %s32
      %38 = dma.hbm_to_vmem [thread:$0]  %s31, 256, %s33, [#allocation6], 128, 128, 8
    $region9: #{tpu_custom_call.1} parent=1 // pred_fallthru
      _
    // Predicated region
    $region10: #{tpu_custom_call.1} parent=1 // pred_check
      _
    $region11: #{tpu_custom_call.1} parent=1 // pred_check_branch
      %40 = sbr.rel (0) target = $region13
    $region12: #{tpu_custom_call.1} parent=1 // pred_region
      _
    $region13: #{tpu_custom_call.1} parent=1 // pred_fallthru
      _
    // Predicated region
    $region14: #{tpu_custom_call.1} parent=1 // pred_check
      _
    $region15: #{tpu_custom_call.1} parent=1 // pred_check_branch
      %42 = sbr.rel (0) target = $region17
    $region16: #{tpu_custom_call.1} parent=1 // pred_region
      _
    $region17: #{tpu_custom_call.1} parent=1 // pred_fallthru
      _
    // Predicated region
    $region18: #{tpu_custom_call.1} parent=1 // pred_check
      _
    $region19: #{tpu_custom_call.1} parent=1 // pred_check_branch
      %44 = sbr.rel (0) target = $region21
    $region20: #{tpu_custom_call.1} parent=1 // pred_region
      _
    $region21: #{tpu_custom_call.1} parent=1 // pred_fallthru
      _
    // Predicated region
    $region22: #{tpu_custom_call.1} parent=1 // pred_check
      _
    $region23: #{tpu_custom_call.1} parent=1 // pred_check_branch
      %46 = sbr.rel (0) target = $region25
    $region24: #{tpu_custom_call.1} parent=1 // pred_region
      %48 = dma.done [#allocation4], 256
    $region25: #{tpu_custom_call.1} parent=1 // pred_fallthru
      _
    // Predicated region
    $region26: #{tpu_custom_call.1} parent=1 // pred_check
      _
    $region27: #{tpu_custom_call.1} parent=1 // pred_check_branch
      %50 = sbr.rel (0) target = $region29
    $region28: #{tpu_custom_call.1} parent=1 // pred_region
      %52 = dma.done [#allocation6], 256
    $region29: #{tpu_custom_call.1} parent=1 // pred_fallthru
      _
    %v53 = vld [vmem:[#allocation3] sm:$0xff]
    %v54 = vld [vmem:[#allocation3 + $0x8] sm:$0xff]
    %v55 = vld [vmem:[%s2] sm:$0x1]
    %v57 = vperm.slane %v55, 0
    %v59 = vmul.f32 %v53, %v57
    %v60 = vmul.f32 %v54, %v57
    %vm61 = vcmask 97280
    %v62 = vsel %vm61, %v59, 0.0
    %63 = vadd.xlane.f32.xlu0 %v62
    %v64 = vpop.xlane.xlu0 %63
    %v65 = vsel %vm61, %v60, 0.0
    %66 = vadd.xlane.f32.xlu0 %v65
    %v67 = vpop.xlane.xlu0 %66
    %v68 = vld [vmem:[#allocation5] sm:$0xff]
    %v69 = vld [vmem:[#allocation5 + $0x8] sm:$0xff]
    %v70 = vld [vmem:[%s3] sm:$0x1]
    %v72 = vperm.slane %v70, 0
    %v74 = vmul.f32 %v68, %v72
    %v75 = vmul.f32 %v69, %v72
    %vm76 = vcmask 162816
    %v77 = vsel %vm76, %v74, 0.0
    %78 = vadd.xlane.f32.xlu0 %v77
    %v79 = vpop.xlane.xlu0 %78
    %v80 = vsel %vm76, %v75, 0.0
    %81 = vadd.xlane.f32.xlu0 %v80
    %v82 = vpop.xlane.xlu0 %81
    %v83 = vadd.f32 %v64, %v79
    %v84 = vadd.f32 %v67, %v82
    %s85 = sld [smem:[#allocation2]]
    %v86 = vstv %s85
    %v87 = vadd.f32 %v83, %v86
    %v88 = vadd.f32 %v84, %v86
    %vm89 = vcmask 7168
    %90 = vst.msk [vmem:[%s5] sm:$0xff] %vm89, %v87
    %91 = vst.msk [vmem:[%s5 + $0x8] sm:$0xff] %vm89, %v88
    // Predicated region
    $region30: #{tpu_custom_call.1} parent=1 // pred_check
      _
    $region31: #{tpu_custom_call.1} parent=1 // pred_check_branch
      %93 = sbr.rel (0) target = $region33
    $region32: #{tpu_custom_call.1} parent=1 // pred_region
      _
    $region33: #{tpu_custom_call.1} parent=1 // pred_fallthru
      _
    // Predicated region
    $region34: #{tpu_custom_call.1} parent=1 // pred_check
      _
    $region35: #{tpu_custom_call.1} parent=1 // pred_check_branch
      %95 = sbr.rel (0) target = $region37
    $region36: #{tpu_custom_call.1} parent=1 // pred_region
      _
    $region37: #{tpu_custom_call.1} parent=1 // pred_fallthru
      _
    %96 = vsyncpa [#allocation4], 1
    %97 = vsyncpa [#allocation6], 1

</llo_original>
